<compile_context>
chip_gen: v6e
topology: v6e:2x2x1
jax: 0.10.0
libtpu: 0.0.40
codegen_flags: <defaults>
</compile_context>

<pallas_src>
import jax
import jax.numpy as jnp
from jax.experimental import pallas as pl
from jax.experimental.pallas import tpu as pltpu

_NEG_SLOPE = 0.01  # PyTorch nn.LeakyReLU default negative_slope


def _conv_block_kernel(patches_ref, w_ref, b_ref, o_ref):
    # patches: (tile_m, Kp)  w: (Kp, tile_n)  b: (1, tile_n) f32  o: (tile_m, tile_n)
    acc = jnp.dot(patches_ref[...], w_ref[...],
                  preferred_element_type=jnp.float32)
    acc = acc + b_ref[...]                            # bias broadcast over rows (f32)
    acc = jnp.where(acc >= 0, acc, _NEG_SLOPE * acc)  # LeakyReLU epilogue (f32)
    o_ref[...] = acc.astype(o_ref.dtype)


def _round_up(x, m):
    return ((x + m - 1) // m) * m


def conv_block_forward(x, weight, bias, *, compute_dtype=jnp.float32,
                       channels_last=False):
    """ConvBlock forward: Conv2d(k=3, stride=2, pad=1, bias=True) + LeakyReLU.

    x:      (B, Cin, H, W)   (NCHW, matching PyTorch)
    weight: (Cout, Cin, 3, 3)
    bias:   (Cout,)
    compute_dtype: jnp.float32 or jnp.bfloat16.  bf16 halves HBM traffic on every
        generation (biggest relative win on bandwidth-limited v5e) and hits the
        v6e/v7x MXU bf16 peak; accumulation is always f32.
    channels_last: return (B, Ho, Wo, Cout) and skip the NHWC->NCHW transpose.
    returns (B, Cout, Ho, Wo)  (or NHWC if channels_last=True)
    """
    B, Cin, H, W = x.shape
    Cout = weight.shape[0]
    stride, pad, k = 2, 1, 3
    Ho = (H + 2 * pad - k) // stride + 1
    Wo = (W + 2 * pad - k) // stride + 1

    M = B * Ho * Wo
    K = Cin * k * k
    Kp = _round_up(K, 128)                 # lane-dense K (unmasked loads, full MXU passes)

    itemsize = jnp.dtype(compute_dtype).itemsize
    out_dtype = jnp.float32 if jnp.dtype(compute_dtype) == jnp.dtype(jnp.float32) \
        else jnp.dtype(compute_dtype)
    out_itemsize = jnp.dtype(out_dtype).itemsize

    # --- Cout / N tiling -------------------------------------------------------------
    TILE_N_MAX = 512
    if Cout >= 128:
        Coutn = _round_up(Cout, 128)       # lane-dense output stores
        if Coutn > TILE_N_MAX:
            Coutn = _round_up(Coutn, TILE_N_MAX)
            tile_n = TILE_N_MAX            # keep weights block small (v7x 64 MiB VMEM)
        else:
            tile_n = Coutn
    else:
        # Tiny Cout: keep the true width (masked vst) instead of a 16x-padded writeback.
        Coutn = Cout
        tile_n = Cout

    # --- VMEM budget & tile_m sizing (computed upward from the budget) ---------------
    try:
        vmem_cap = int(pltpu.get_tpu_info().vmem_capacity_bytes)
    except Exception:
        vmem_cap = 64 * 1024 * 1024        # v7x per-TensorCore size: safe lower bound
    vmem_limit = min(max(vmem_cap - 8 * 1024 * 1024, 32 * 1024 * 1024),
                     100 * 1024 * 1024)    # ~100 MiB on v5e/v6e, ~56 MiB on v7x
    budget = int(vmem_limit * 0.8)

    granule_m = 16 if itemsize == 2 else 8        # bf16 packs 2 rows / sublane
    # Conservative accounting: 2x weights+bias (covers the double-buffered fallback).
    resident = 2 * (Kp * tile_n * itemsize + tile_n * 4)
    row_bytes = 2 * (Kp * itemsize + tile_n * out_itemsize)  # dbl-buffered patch + out rows
    tile_m = (budget - resident) // row_bytes if budget > resident else granule_m
    tile_m = max(granule_m, min(int(tile_m), 2048))
    # >= 2 grid steps along M so ("parallel", ...) can engage both v7x TensorCores.
    half_m = _round_up(max((M + 1) // 2, granule_m), granule_m)
    tile_m = min(tile_m, half_m)
    if tile_m >= 256:
        tile_m = (tile_m // 256) * 256     # full 256-wide MXU LHS pushes on v6e/v7x
    else:
        tile_m = max(granule_m, (tile_m // granule_m) * granule_m)
    Mp = _round_up(M, tile_m)
    grid = (Mp // tile_m, Coutn // tile_n)

    # --- glue: im2col in NHWC order (transpose the small x once, taps concat on lanes)
    xc = x.astype(compute_dtype)
    xp = jnp.pad(jnp.transpose(xc, (0, 2, 3, 1)),            # (B, H, W, Cin)
                 ((0, 0), (pad, pad), (pad, pad), (0, 0)))
    taps = [xp[:, ky:ky + stride * Ho:stride, kx:kx + stride * Wo:stride, :]
            for ky in range(k) for kx in range(k)]            # each (B, Ho, Wo, Cin)
    patches = jnp.concatenate(taps, axis=-1).reshape(M, K)    # K index = (ky*3+kx)*Cin+cin
    if (Mp - M) or (Kp - K):
        patches = jnp.pad(patches, ((0, Mp - M), (0, Kp - K)))

    # Weights in tap-major K order to match the patch layout; zero-pad K and Cout.
    w2 = jnp.transpose(weight.astype(compute_dtype), (2, 3, 1, 0)).reshape(K, Cout)
    w2 = jnp.pad(w2, ((0, Kp - K), (0, Coutn - Cout)))
    b2 = jnp.pad(bias.astype(jnp.float32), (0, Coutn - Cout)).reshape(1, Coutn)

    cost = pl.CostEstimate(
        flops=2 * Mp * Kp * Coutn,
        transcendentals=0,
        bytes_accessed=Mp * Kp * itemsize + Kp * Coutn * itemsize
        + Mp * Coutn * out_itemsize,
    )

    def _call(weight_buffer_count):
        if weight_buffer_count is not None:
            w_spec = pl.BlockSpec((Kp, tile_n), lambda i, j: (0, j),
                                  pipeline_mode=pl.Buffered(weight_buffer_count))
            b_spec = pl.BlockSpec((1, tile_n), lambda i, j: (0, j),
                                  pipeline_mode=pl.Buffered(weight_buffer_count))
        else:
            w_spec = pl.BlockSpec((Kp, tile_n), lambda i, j: (0, j))
            b_spec = pl.BlockSpec((1, tile_n), lambda i, j: (0, j))
        return pl.pallas_call(
            _conv_block_kernel,
            out_shape=jax.ShapeDtypeStruct((Mp, Coutn), out_dtype),
            grid=grid,
            in_specs=[
                pl.BlockSpec((tile_m, Kp), lambda i, j: (i, 0)),  # patch rows: M-tiled
                w_spec,                                           # weights: N-tiled
                b_spec,                                           # bias
            ],
            out_specs=pl.BlockSpec((tile_m, tile_n), lambda i, j: (i, j)),
            compiler_params=pltpu.CompilerParams(
                dimension_semantics=("parallel", "parallel"),
                vmem_limit_bytes=vmem_limit,
            ),
            cost_estimate=cost,
        )(patches, w2, b2)

    out = None
    if grid[1] == 1:
        # Weight/bias block index is constant across the grid -> one VMEM buffer suffices.
        try:
            out = _call(1)
        except Exception:
            out = None
    if out is None:
        out = _call(None)
    # TODO(synk): add a K reduction grid axis ("arbitrary" + f32 VMEM accumulator) for
    # very large Cin, instead of keeping the full Kp resident per N tile.

    # Drop padding, restore layout, cast — in one fused expression.
    out = out[:M, :Cout].reshape(B, Ho, Wo, Cout)
    if not channels_last:
        out = out.transpose(0, 3, 1, 2)
    return out.astype(x.dtype)


def _reference(x, weight, bias):
    y = jax.lax.conv_general_dilated(
        x, weight, window_strides=(2, 2), padding=((1, 1), (1, 1)),
        dimension_numbers=("NCHW", "OIHW", "NCHW"))
    y = y + bias.reshape(1, -1, 1, 1)
    return jnp.where(y >= 0, y, _NEG_SLOPE * y)


if __name__ == "__main__":
    key = jax.random.PRNGKey(0)
    kx, kw, kb = jax.random.split(key, 3)

    B, Cin, Cout, H, W = 2, 4, 8, 16, 16
    x = jax.random.normal(kx, (B, Cin, H, W), dtype=jnp.float32)
    fan_in = Cin * 3 * 3
    weight = jax.random.normal(kw, (Cout, Cin, 3, 3), dtype=jnp.float32) / jnp.sqrt(fan_in)
    bias = jax.random.normal(kb, (Cout,), dtype=jnp.float32) * 0.1

    y_ref = _reference(x, weight, bias)

    # f32 operand path (tight tolerance)
    y = conv_block_forward(x, weight, bias, compute_dtype=jnp.float32)
    jax.block_until_ready(y)
    assert y.shape == (B, Cout, 8, 8), y.shape
    assert jnp.allclose(y, y_ref, atol=1e-5, rtol=1e-5)

    # bf16 operand / f32 accumulation path (bandwidth + MXU win on all generations)
    y_bf16 = conv_block_forward(x, weight, bias, compute_dtype=jnp.bfloat16)
    jax.block_until_ready(y_bf16)
    assert y_bf16.shape == (B, Cout, 8, 8), y_bf16.shape
    assert jnp.allclose(y_bf16, y_ref, atol=3e-2, rtol=3e-2)

    # NHWC output path (skips the final transpose)
    y_nhwc = conv_block_forward(x, weight, bias, compute_dtype=jnp.float32,
                                channels_last=True)
    jax.block_until_ready(y_nhwc)
    assert jnp.allclose(y_nhwc.transpose(0, 3, 1, 2), y_ref, atol=1e-5, rtol=1e-5)

    print("KERNEL_OK")
</pallas_src>

<mosaic_0001>
module attributes {stable_mosaic.version = 11 : i64} {
  func.func @_conv_block_kernel(%arg0: i32, %arg1: i32, %arg2: memref<64x128xf32, #tpu.memory_space<vmem>>, %arg3: memref<128x8xf32, #tpu.memory_space<vmem>>, %arg4: memref<1x8xf32, #tpu.memory_space<vmem>>, %arg5: memref<64x8xf32, #tpu.memory_space<vmem>>) attributes {dimension_semantics = [#tpu.dimension_semantics<parallel>, #tpu.dimension_semantics<parallel>], iteration_bounds = array<i64: 2, 1>, scalar_prefetch = 0 : i64, scratch_operands = 0 : i64, tpu.core_type = #tpu.core_type<tc>, window_params = [{transform_indices = @transform_0, window_bounds = array<i64: 64, 128>}, {pipeline_mode = #tpu.pipeline_mode<synchronous>, transform_indices = @transform_1, window_bounds = array<i64: 128, 8>}, {pipeline_mode = #tpu.pipeline_mode<synchronous>, transform_indices = @transform_2, window_bounds = array<i64: 1, 8>}, {transform_indices = @transform_3, window_bounds = array<i64: 64, 8>}]} {
    %c0 = arith.constant 0 : index
    %c0_0 = arith.constant 0 : index
    %0 = vector.load %arg2[%c0, %c0_0] : memref<64x128xf32, #tpu.memory_space<vmem>>, vector<64x128xf32>
    %c0_1 = arith.constant 0 : index
    %c0_2 = arith.constant 0 : index
    %1 = vector.load %arg3[%c0_1, %c0_2] : memref<128x8xf32, #tpu.memory_space<vmem>>, vector<128x8xf32>
    %cst = arith.constant dense<0.000000e+00> : vector<64x8xf32>
    %2 = tpu.matmul %0, %1, %cst {dimension_numbers = #tpu.dot_dimension_numbers<[1], [0], [0], [1], [0, 0, 1, 1], [], []>} : vector<64x128xf32>, vector<128x8xf32>, vector<64x8xf32> -> vector<64x8xf32>
    %c0_3 = arith.constant 0 : index
    %c0_4 = arith.constant 0 : index
    %3 = vector.load %arg4[%c0_3, %c0_4] : memref<1x8xf32, #tpu.memory_space<vmem>>, vector<1x8xf32>
    %4 = vector.broadcast %3 : vector<1x8xf32> to vector<64x8xf32>
    %5 = arith.addf %2, %4 : vector<64x8xf32>
    %cst_5 = arith.constant 0.000000e+00 : f32
    %6 = vector.broadcast %cst_5 : f32 to vector<64x8xf32>
    %7 = arith.cmpf oge, %5, %6 : vector<64x8xf32>
    %cst_6 = arith.constant 0.00999999977 : f32
    %8 = vector.broadcast %cst_6 : f32 to vector<64x8xf32>
    %9 = arith.mulf %8, %5 : vector<64x8xf32>
    %10 = arith.select %7, %5, %9 : vector<64x8xi1>, vector<64x8xf32>
    %c0_7 = arith.constant 0 : index
    %c0_8 = arith.constant 0 : index
    %11 = vector.load %arg5[%c0_7, %c0_8] : memref<64x8xf32, #tpu.memory_space<vmem>>, vector<64x8xf32>
    tpu.vector_store %arg5[%c0_7, %c0_8], %10 {strides = array<i32>} : memref<64x8xf32, #tpu.memory_space<vmem>>, vector<64x8xf32>,
    return
  }
  func.func @transform_0(%arg0: i32, %arg1: i32) -> (i32, i32) {
    %c0_i32 = arith.constant 0 : i32
    %c0_i32_0 = arith.constant 0 : i32
    return %arg0, %c0_i32 : i32, i32
  }
  func.func @transform_1(%arg0: i32, %arg1: i32) -> (i32, i32) {
    %c0_i32 = arith.constant 0 : i32
    %c0_i32_0 = arith.constant 0 : i32
    return %c0_i32, %arg1 : i32, i32
  }
  func.func @transform_2(%arg0: i32, %arg1: i32) -> (i32, i32) {
    %c0_i32 = arith.constant 0 : i32
    %c0_i32_0 = arith.constant 0 : i32
    return %c0_i32, %arg1 : i32, i32
  }
  func.func @transform_3(%arg0: i32, %arg1: i32) -> (i32, i32) {
    %c0_i32 = arith.constant 0 : i32
    return %arg0, %arg1 : i32, i32
  }
}

module attributes {stable_mosaic.version = 11 : i64} {
  func.func @_conv_block_kernel(%arg0: i32, %arg1: i32, %arg2: memref<64x128xf32, #tpu.memory_space<vmem>>, %arg3: memref<128x8xf32, #tpu.memory_space<vmem>>, %arg4: memref<1x8xf32, #tpu.memory_space<vmem>>, %arg5: memref<64x8xf32, #tpu.memory_space<vmem>>) attributes {dimension_semantics = [#tpu.dimension_semantics<parallel>, #tpu.dimension_semantics<parallel>], iteration_bounds = array<i64: 2, 1>, scalar_prefetch = 0 : i64, scratch_operands = 0 : i64, tpu.core_type = #tpu.core_type<tc>, window_params = [{transform_indices = @transform_0, window_bounds = array<i64: 64, 128>}, {transform_indices = @transform_1, window_bounds = array<i64: 128, 8>}, {transform_indices = @transform_2, window_bounds = array<i64: 1, 8>}, {transform_indices = @transform_3, window_bounds = array<i64: 64, 8>}]} {
    %c0 = arith.constant 0 : index
    %c0_0 = arith.constant 0 : index
    %0 = vector.load %arg2[%c0, %c0_0] : memref<64x128xf32, #tpu.memory_space<vmem>>, vector<64x128xf32>
    %c0_1 = arith.constant 0 : index
    %c0_2 = arith.constant 0 : index
    %1 = vector.load %arg3[%c0_1, %c0_2] : memref<128x8xf32, #tpu.memory_space<vmem>>, vector<128x8xf32>
    %cst = arith.constant dense<0.000000e+00> : vector<64x8xf32>
    %2 = tpu.matmul %0, %1, %cst {dimension_numbers = #tpu.dot_dimension_numbers<[1], [0], [0], [1], [0, 0, 1, 1], [], []>} : vector<64x128xf32>, vector<128x8xf32>, vector<64x8xf32> -> vector<64x8xf32>
    %c0_3 = arith.constant 0 : index
    %c0_4 = arith.constant 0 : index
    %3 = vector.load %arg4[%c0_3, %c0_4] : memref<1x8xf32, #tpu.memory_space<vmem>>, vector<1x8xf32>
    %4 = vector.broadcast %3 : vector<1x8xf32> to vector<64x8xf32>
    %5 = arith.addf %2, %4 : vector<64x8xf32>
    %cst_5 = arith.constant 0.000000e+00 : f32
    %6 = vector.broadcast %cst_5 : f32 to vector<64x8xf32>
    %7 = arith.cmpf oge, %5, %6 : vector<64x8xf32>
    %cst_6 = arith.constant 0.00999999977 : f32
    %8 = vector.broadcast %cst_6 : f32 to vector<64x8xf32>
    %9 = arith.mulf %8, %5 : vector<64x8xf32>
    %10 = arith.select %7, %5, %9 : vector<64x8xi1>, vector<64x8xf32>
    %c0_7 = arith.constant 0 : index
    %c0_8 = arith.constant 0 : index
    %11 = vector.load %arg5[%c0_7, %c0_8] : memref<64x8xf32, #tpu.memory_space<vmem>>, vector<64x8xf32>
    tpu.vector_store %arg5[%c0_7, %c0_8], %10 {strides = array<i32>} : memref<64x8xf32, #tpu.memory_space<vmem>>, vector<64x8xf32>,
    return
  }
  func.func @transform_0(%arg0: i32, %arg1: i32) -> (i32, i32) {
    %c0_i32 = arith.constant 0 : i32
    %c0_i32_0 = arith.constant 0 : i32
    return %arg0, %c0_i32 : i32, i32
  }
  func.func @transform_1(%arg0: i32, %arg1: i32) -> (i32, i32) {
    %c0_i32 = arith.constant 0 : i32
    %c0_i32_0 = arith.constant 0 : i32
    return %c0_i32, %arg1 : i32, i32
  }
  func.func @transform_2(%arg0: i32, %arg1: i32) -> (i32, i32) {
    %c0_i32 = arith.constant 0 : i32
    %c0_i32_0 = arith.constant 0 : i32
    return %c0_i32, %arg1 : i32, i32
  }
  func.func @transform_3(%arg0: i32, %arg1: i32) -> (i32, i32) {
    %c0_i32 = arith.constant 0 : i32
    return %arg0, %arg1 : i32, i32
  }
}

</mosaic_0001>

<llo_original>
// kernel: tpu_custom_call.1
$region0: #{tpu_custom_call.1}
  #allocation0 [shape = 'u32[]', space=smem, size = 0x4, offset = 0x4, fixed_abs, tag = 'smem constant byte address 0x4 - core index']
  #allocation1 [shape = 'u32[144,128]{1,0:T(1,128)}', space=vmem, size = 0x12000, scoped, tag = 'internal scratch']
  %s0 = inlined_call_operand.vmem [shape: f32[128,128], index: 0, kind: input, shape index: {}]
  %s1 = inlined_call_operand.vmem [shape: f32[128,8], index: 1, kind: input, shape index: {}]
  %s2 = inlined_call_operand.vmem [shape: f32[1,8], index: 2, kind: input, shape index: {}]
  %s3 = inlined_call_operand.vmem [shape: f32[128,8], index: 3, kind: output, shape index: {}]
  %s4 = sld [smem:[#allocation0]]
  $region45: #{tpu_custom_call.1} parent=0
    _
  %s6 = ssub.s32 1, %s4
  %s7 = scalar_select 0, %s6, %s4
  loop: start=0, step=1, limit=4
  $region2: #{tpu_custom_call.1} parent=0 // loop_pre_header
    _
  $region3: #{tpu_custom_call.1} parent=0 // loop_header
    %s9 = sphi 0, %s13
    %p10 = scmp.ge.s32.totalorder %s9, 4
    %s16 = sphi 0, %s28
    %s17 = sphi 0, %s24
    %s18 = sphi 0, %s16
    %s19 = sphi 0, %s17
    %s20 = sphi 0, %s18
    %s21 = sphi 0, %s19
    %s31 = sphi 0, %s33
    %s34 = sphi 0, %s31
    %s35 = sphi 0, %s34
    %s51 = sphi 0, %s35
    %s57 = sphi 0, %s59
    %s60 = sphi 0, %s57
    %s61 = sphi 0, %s60
    %s77 = sphi 0, %s61
    %s83 = sphi 0, %s85
    %s86 = sphi 0, %s83
    %s87 = sphi 0, %s86
    %s103 = sphi 0, %s87
    %s111 = sphi 0, %s113
    %s114 = sphi 0, %s111
    %s115 = sphi 0, %s114
    %s131 = sphi 0, %s115
  $region4: #{tpu_custom_call.1} parent=0 // loop_header_branch
    %12 = sbr.rel (%p10) target = $region8
  $region5: #{tpu_custom_call.1} parent=0 // loop_body
    %s14 = ssub.s32 %s9, 1
    %s15 = ssub.s32 %s9, 2
    %s22 = sadd.s32 1, %s17
    %p23 = scmp.ge.s32.totalorder %s22, 1
    %s24 = scalar_select %p23, 0, %s22
    %s25 = sadd.s32 1, %s16
    %s26 = scalar_select %p23, %s25, %s16
    %p27 = scmp.ge.s32.totalorder %s26, 2
    %s28 = scalar_select %p27, 0, %s26
    %s29 = ssub.s32 %s16, %s28
    %p30 = scmp.eq.s32.totalorder %s29, 0
    %s32 = sadd.s32 %s31, 1
    %s33 = scalar_select %p30, %s31, %s32
    %p36 = pneg %p30
    %p37 = scmp.eq.s32.totalorder %s9, 1
    %p38 = por %p36, %p37
    %p39 = scmp.ne.s32.totalorder %s31, %s34
    %p40 = scmp.eq.s32.totalorder %s9, 0
    %p41 = por %p39, %p40
    %p42 = scmp.ne.s32.totalorder %s31, %s34
    %p43 = scmp.eq.s32.totalorder %s14, 1
    %p44 = por %p42, %p43
    %p45 = scmp.ne.s32.totalorder %s34, %s35
    %p46 = scmp.eq.s32.totalorder %s14, 0
    %p47 = por %p45, %p46
    %p48 = scmp.ne.s32.totalorder %s34, %s35
    %p49 = scmp.eq.s32.totalorder %s15, 1
    %p50 = por %p48, %p49
    %p52 = scmp.ne.s32.totalorder %s35, %s51
    %p53 = scmp.eq.s32.totalorder %s15, 0
    %p54 = por %p52, %p53
    %s55 = ssub.s32 %s17, %s24
    %p56 = scmp.eq.s32.totalorder %s55, 0
    %s58 = sadd.s32 %s57, 1
    %s59 = scalar_select %p56, %s57, %s58
    %p62 = pneg %p56
    %p63 = scmp.eq.s32.totalorder %s9, 1
    %p64 = por %p62, %p63
    %p65 = scmp.ne.s32.totalorder %s57, %s60
    %p66 = scmp.eq.s32.totalorder %s9, 0
    %p67 = por %p65, %p66
    %p68 = scmp.ne.s32.totalorder %s57, %s60
    %p69 = scmp.eq.s32.totalorder %s14, 1
    %p70 = por %p68, %p69
    %p71 = scmp.ne.s32.totalorder %s60, %s61
    %p72 = scmp.eq.s32.totalorder %s14, 0
    %p73 = por %p71, %p72
    %p74 = scmp.ne.s32.totalorder %s60, %s61
    %p75 = scmp.eq.s32.totalorder %s15, 1
    %p76 = por %p74, %p75
    %p78 = scmp.ne.s32.totalorder %s61, %s77
    %p79 = scmp.eq.s32.totalorder %s15, 0
    %p80 = por %p78, %p79
    %s81 = ssub.s32 %s17, %s24
    %p82 = scmp.eq.s32.totalorder %s81, 0
    %s84 = sadd.s32 %s83, 1
    %s85 = scalar_select %p82, %s83, %s84
    %p88 = pneg %p82
    %p89 = scmp.eq.s32.totalorder %s9, 1
    %p90 = por %p88, %p89
    %p91 = scmp.ne.s32.totalorder %s83, %s86
    %p92 = scmp.eq.s32.totalorder %s9, 0
    %p93 = por %p91, %p92
    %p94 = scmp.ne.s32.totalorder %s83, %s86
    %p95 = scmp.eq.s32.totalorder %s14, 1
    %p96 = por %p94, %p95
    %p97 = scmp.ne.s32.totalorder %s86, %s87
    %p98 = scmp.eq.s32.totalorder %s14, 0
    %p99 = por %p97, %p98
    %p100 = scmp.ne.s32.totalorder %s86, %s87
    %p101 = scmp.eq.s32.totalorder %s15, 1
    %p102 = por %p100, %p101
    %p104 = scmp.ne.s32.totalorder %s87, %s103
    %p105 = scmp.eq.s32.totalorder %s15, 0
    %p106 = por %p104, %p105
    %s107 = ssub.s32 %s16, %s28
    %s108 = ssub.s32 %s17, %s24
    %s109 = sor.u32 %s107, %s108
    %p110 = scmp.eq.s32.totalorder %s109, 0
    %s112 = sadd.s32 %s111, 1
    %s113 = scalar_select %p110, %s111, %s112
    %p116 = pneg %p110
    %p117 = scmp.eq.s32.totalorder %s9, 1
    %p118 = por %p116, %p117
    %p119 = scmp.ne.s32.totalorder %s111, %s114
    %p120 = scmp.eq.s32.totalorder %s9, 0
    %p121 = por %p119, %p120
    %p122 = scmp.ne.s32.totalorder %s111, %s114
    %p123 = scmp.eq.s32.totalorder %s14, 1
    %p124 = por %p122, %p123
    %p125 = scmp.ne.s32.totalorder %s114, %s115
    %p126 = scmp.eq.s32.totalorder %s14, 0
    %p127 = por %p125, %p126
    %p128 = scmp.ne.s32.totalorder %s114, %s115
    %p129 = scmp.eq.s32.totalorder %s15, 1
    %p130 = por %p128, %p129
    %p132 = scmp.ne.s32.totalorder %s115, %s131
    %p133 = scmp.eq.s32.totalorder %s15, 0
    %p134 = por %p132, %p133
    %p135 = scmp.le.s32.totalorder 1, %s9
    %p136 = scmp.lt.s32.totalorder %s9, 3
    %p137 = pnand %p135, %p136
    %p138 = pneg %p137
    // Predicated region
    $region9: #{tpu_custom_call.1} parent=5 // pred_check
      _
    $region10: #{tpu_custom_call.1} parent=5 // pred_check_branch
      %140 = sbr.rel (%p137) target = $region12
    $region11: #{tpu_custom_call.1} parent=5 // pred_region
      %s141 = ssub.s32 %s9, 1
      // Predicated region
      $region13: #{tpu_custom_call.1} parent=11 // pred_check
        %p142 = pneg %p73
      $region14: #{tpu_custom_call.1} parent=11 // pred_check_branch
        %144 = sbr.rel (%p142) target = $region16
      $region15: #{tpu_custom_call.1} parent=11 // pred_region
        %p145 = scmp.lt.s32.totalorder %s19, 0
        %s146 = scalar_select %p145, %s19, 0
        %s147 = smul.addr %s146, 8
        %s148 = scalar_lea.vmem %s1, %s147
      $region16: #{tpu_custom_call.1} parent=11 // pred_fallthru
        _
      // Predicated region
      $region17: #{tpu_custom_call.1} parent=11 // pred_check
        %p149 = pneg %p99
      $region18: #{tpu_custom_call.1} parent=11 // pred_check_branch
        %151 = sbr.rel (%p149) target = $region20
      $region19: #{tpu_custom_call.1} parent=11 // pred_region
        %p152 = scmp.lt.s32.totalorder %s19, 0
        %s153 = scalar_select %p152, %s19, 0
        %s154 = scalar_lea.vmem %s2, %s153
      $region20: #{tpu_custom_call.1} parent=11 // pred_fallthru
        _
    $region12: #{tpu_custom_call.1} parent=5 // pred_fallthru
      _
    %p155 = scmp.lt.s32.totalorder %s9, 2
    // Predicated region
    $region21: #{tpu_custom_call.1} parent=5 // pred_check
      %p156 = pneg %p155
    $region22: #{tpu_custom_call.1} parent=5 // pred_check_branch
      %158 = sbr.rel (%p156) target = $region24
    $region23: #{tpu_custom_call.1} parent=5 // pred_region
      // Predicated region
      $region25: #{tpu_custom_call.1} parent=23 // pred_check
        %p159 = pneg %p41
      $region26: #{tpu_custom_call.1} parent=23 // pred_check_branch
        %161 = sbr.rel (%p159) target = $region28
      $region27: #{tpu_custom_call.1} parent=23 // pred_region
        %s162 = smul.u32 8, %s16
        %p163 = scmp.lt.s32.totalorder %s162, 15
        %s164 = scalar_select %p163, %s162, 15
        %s165 = smul.addr %s164, 8
        %s166 = scalar_lea.vmem %s0, %s165
        %s167 = smul.u32 8, %s16
      $region28: #{tpu_custom_call.1} parent=23 // pred_fallthru
        _
    $region24: #{tpu_custom_call.1} parent=5 // pred_fallthru
      _
    %p168 = scmp.le.s32.totalorder 1, %s9
    %p169 = scmp.lt.s32.totalorder %s9, 3
    %p170 = pnand %p168, %p169
    %p171 = pneg %p170
    // Predicated region
    $region29: #{tpu_custom_call.1} parent=5 // pred_check
      _
    $region30: #{tpu_custom_call.1} parent=5 // pred_check_branch
      %173 = sbr.rel (%p170) target = $region32
    $region31: #{tpu_custom_call.1} parent=5 // pred_region
      %s174 = ssub.s32 %s9, 1
      %s175 = smul.u32 8, %s18
      %p176 = scmp.lt.s32.totalorder %s175, 15
      %s177 = scalar_select %p176, %s175, 15
      %s178 = smul.addr %s177, 8
      %s179 = scalar_lea.vmem %s0, %s178
      %p180 = pneg %p47
      %p181 = pneg %p44
      %p182 = scmp.lt.s32.totalorder %s19, 0
      %s183 = scalar_select %p182, %s19, 0
      %s184 = smul.addr %s183, 8
      %s185 = scalar_lea.vmem %s1, %s184
      %p186 = pneg %p73
      %p187 = pneg %p70
      %p188 = scmp.lt.s32.totalorder %s19, 0
      %s189 = scalar_select %p188, %s19, 0
      %s190 = scalar_lea.vmem %s2, %s189
      %p191 = pneg %p99
      %p192 = pneg %p96
      %p193 = pneg %p127
      %p194 = pneg %p124
      %s195 = smul.u32 8, %s18
      %p196 = scmp.lt.s32.totalorder %s195, 15
      %s197 = scalar_select %p196, %s195, 15
      %p198 = scmp.lt.s32.totalorder %s19, 0
      %s199 = scalar_select %p198, %s19, 0
      %s200 = sadd.s32 %s199, %s197
      %s201 = smul.addr %s200, 8
      %s202 = scalar_lea.vmem %s3, %s201
      %s203 = smul.u32 8, %s18
      %p204 = scmp.lt.s32.totalorder %s203, 15
      %s205 = scalar_select %p204, %s203, 15
      %s206 = smul.addr %s205, 8
      %s207 = scalar_lea.vmem %s0, %s206
      %s208 = smul.u32 8, %s18
      %p209 = scmp.lt.s32.totalorder %s19, 0
      %s210 = scalar_select %p209, %s19, 0
      %s211 = smul.addr %s210, 8
      %s212 = scalar_lea.vmem %s1, %s211
      %p213 = scmp.lt.s32.totalorder %s19, 0
      %s214 = scalar_select %p213, %s19, 0
      %s215 = scalar_lea.vmem %s2, %s214
      %s216 = smul.u32 8, %s18
      %p217 = scmp.lt.s32.totalorder %s216, 15
      %s218 = scalar_select %p217, %s216, 15
      %p219 = scmp.lt.s32.totalorder %s19, 0
      %s220 = scalar_select %p219, %s19, 0
      %s221 = sadd.s32 %s220, %s218
      %s222 = smul.addr %s221, 8
      %s223 = scalar_lea.vmem %s3, %s222
      %s224 = smul.u32 8, %s18
      %v225 = vld [vmem:[%s207] sm:$0xff]
      %v226 = vld [vmem:[%s207 + $0x8] sm:$0xff]
      %v227 = vld [vmem:[%s207 + $0x10] sm:$0xff]
      %v228 = vld [vmem:[%s207 + $0x18] sm:$0xff]
      %v229 = vld [vmem:[%s207 + $0x20] sm:$0xff]
      %v230 = vld [vmem:[%s207 + $0x28] sm:$0xff]
      %v231 = vld [vmem:[%s207 + $0x30] sm:$0xff]
      %v232 = vld [vmem:[%s207 + $0x38] sm:$0xff]
      %v233 = vld [vmem:[%s212] sm:$0xff]
      %v234 = vld [vmem:[%s212 + $0x8] sm:$0xff]
      %v235 = vld [vmem:[%s212 + $0x10] sm:$0xff]
      %v236 = vld [vmem:[%s212 + $0x18] sm:$0xff]
      %v237 = vld [vmem:[%s212 + $0x20] sm:$0xff]
      %v238 = vld [vmem:[%s212 + $0x28] sm:$0xff]
      %v239 = vld [vmem:[%s212 + $0x30] sm:$0xff]
      %v240 = vld [vmem:[%s212 + $0x38] sm:$0xff]
      %v241 = vld [vmem:[%s212 + $0x40] sm:$0xff]
      %v242 = vld [vmem:[%s212 + $0x48] sm:$0xff]
      %v243 = vld [vmem:[%s212 + $0x50] sm:$0xff]
      %v244 = vld [vmem:[%s212 + $0x58] sm:$0xff]
      %v245 = vld [vmem:[%s212 + $0x60] sm:$0xff]
      %v246 = vld [vmem:[%s212 + $0x68] sm:$0xff]
      %v247 = vld [vmem:[%s212 + $0x70] sm:$0xff]
      %v248 = vld [vmem:[%s212 + $0x78] sm:$0xff]
      %v249 = vld [vmem:[%s215] sm:$0x1]
      %v251 = vlaneseq
      %v252 = vshrl.u32 %v251, 7
      %v253 = vsub.s32 0, %v252
      %v254 = vrot.slane %v249, %v253
      %256 = vmatprep.subr.mxu0 0.0
      %257 = vmatpush1.msra.mxu0 %v248
      %258 = vmatprep.subr.mxu0 0.0
      %259 = vmatpush1.msra.mxu0 %v247
      %260 = vmatprep.subr.mxu0 0.0
      %261 = vmatpush1.msra.mxu0 %v246
      %262 = vmatprep.subr.mxu0 0.0
      %263 = vmatpush1.msra.mxu0 %v245
      %264 = vmatprep.subr.mxu0 0.0
      %265 = vmatpush1.msra.mxu0 %v244
      %266 = vmatprep.subr.mxu0 0.0
      %267 = vmatpush1.msra.mxu0 %v243
      %268 = vmatprep.subr.mxu0 0.0
      %269 = vmatpush1.msra.mxu0 %v242
      %270 = vmatprep.subr.mxu0 0.0
      %271 = vmatpush1.msra.mxu0 %v241
      %272 = vmatprep.subr.mxu0 0.0
      %273 = vmatpush1.msra.mxu0 %v240
      %274 = vmatprep.subr.mxu0 0.0
      %275 = vmatpush1.msra.mxu0 %v239
      %276 = vmatprep.subr.mxu0 0.0
      %277 = vmatpush1.msra.mxu0 %v238
      %278 = vmatprep.subr.mxu0 0.0
      %279 = vmatpush1.msra.mxu0 %v237
      %280 = vmatprep.subr.mxu0 0.0
      %281 = vmatpush1.msra.mxu0 %v236
      %282 = vmatprep.subr.mxu0 0.0
      %283 = vmatpush1.msra.mxu0 %v235
      %284 = vmatprep.subr.mxu0 0.0
      %285 = vmatpush1.msra.mxu0 %v234
      %286 = vmatprep.subr.mxu0 0.0
      %287 = vmatpush1.msra.mxu0 %v233
      %288 = vmatprep.subr.mxu0 0.0
      %289 = vmatpush2.msra.mxu0 0.0
      %290 = vmatprep.subr.mxu0 0.0
      %291 = vmatpush2.msra.mxu0 0.0
      %292 = vmatprep.subr.mxu0 0.0
      %293 = vmatpush2.msra.mxu0 0.0
      %294 = vmatprep.subr.mxu0 0.0
      %295 = vmatpush2.msra.mxu0 0.0
      %296 = vmatprep.subr.mxu0 0.0
      %297 = vmatpush2.msra.mxu0 0.0
      %298 = vmatprep.subr.mxu0 0.0
      %299 = vmatpush2.msra.mxu0 0.0
      %300 = vmatprep.subr.mxu0 0.0
      %301 = vmatpush2.msra.mxu0 0.0
      %302 = vmatprep.subr.mxu0 0.0
      %303 = vmatpush2.msra.mxu0 0.0
      %304 = vmatprep.subr.mxu0 0.0
      %305 = vmatpush2.msra.mxu0 0.0
      %306 = vmatprep.subr.mxu0 0.0
      %307 = vmatpush2.msra.mxu0 0.0
      %308 = vmatprep.subr.mxu0 0.0
      %309 = vmatpush2.msra.mxu0 0.0
      %310 = vmatprep.subr.mxu0 0.0
      %311 = vmatpush2.msra.mxu0 0.0
      %312 = vmatprep.subr.mxu0 0.0
      %313 = vmatpush2.msra.mxu0 0.0
      %314 = vmatprep.subr.mxu0 0.0
      %315 = vmatpush2.msra.mxu0 0.0
      %316 = vmatprep.subr.mxu0 0.0
      %317 = vmatpush2.msra.mxu0 0.0
      %318 = vmatprep.subr.mxu0 0.0
      %319 = vmatpush2.msra.mxu0 0.0
      %320 = vmatprep.mubr.f32.mxu0 0.0
      %321 = vmatmul.mubr.f32.gmra.mxu0 %v225
      %v322 = vpop.f32.mrf.mxu0
      %v323 = vadd.f32 %v254, %v322
      %v324 = vpop.f32.mrf.mxu0
      %325 = vmatprep.mubr.f32.mxu0 0.0
      %326 = vmatmul.mubr.f32.gmra.mxu0 %v226
      %v327 = vpop.f32.mrf.mxu0
      %v328 = vadd.f32 %v254, %v327
      %v329 = vpop.f32.mrf.mxu0
      %330 = vmatprep.mubr.f32.mxu0 0.0
      %331 = vmatmul.mubr.f32.gmra.mxu0 %v227
      %v332 = vpop.f32.mrf.mxu0
      %v333 = vadd.f32 %v254, %v332
      %v334 = vpop.f32.mrf.mxu0
      %335 = vmatprep.mubr.f32.mxu0 0.0
      %336 = vmatmul.mubr.f32.gmra.mxu0 %v228
      %v337 = vpop.f32.mrf.mxu0
      %v338 = vadd.f32 %v254, %v337
      %v339 = vpop.f32.mrf.mxu0
      %340 = vmatprep.mubr.f32.mxu0 0.0
      %341 = vmatmul.mubr.f32.gmra.mxu0 %v229
      %v342 = vpop.f32.mrf.mxu0
      %v343 = vadd.f32 %v254, %v342
      %v344 = vpop.f32.mrf.mxu0
      %345 = vmatprep.mubr.f32.mxu0 0.0
      %346 = vmatmul.mubr.f32.gmra.mxu0 %v230
      %v347 = vpop.f32.mrf.mxu0
      %v348 = vadd.f32 %v254, %v347
      %v349 = vpop.f32.mrf.mxu0
      %350 = vmatprep.mubr.f32.mxu0 0.0
      %351 = vmatmul.mubr.f32.gmra.mxu0 %v231
      %v352 = vpop.f32.mrf.mxu0
      %v353 = vadd.f32 %v254, %v352
      %v354 = vpop.f32.mrf.mxu0
      %355 = vmatprep.mubr.f32.mxu0 0.0
      %356 = vmatmul.mubr.f32.gmra.mxu0 %v232
      %v357 = vpop.f32.mrf.mxu0
      %v358 = vadd.f32 %v254, %v357
      %v359 = vpop.f32.mrf.mxu0
      %360 = vdwg.mxu0
      %vm361 = vcmp.ge.f32.partialorder %v323, 0.0
      %vm362 = vcmp.ge.f32.partialorder %v328, 0.0
      %vm363 = vcmp.ge.f32.partialorder %v333, 0.0
      %vm364 = vcmp.ge.f32.partialorder %v338, 0.0
      %vm365 = vcmp.ge.f32.partialorder %v343, 0.0
      %vm366 = vcmp.ge.f32.partialorder %v348, 0.0
      %vm367 = vcmp.ge.f32.partialorder %v353, 0.0
      %vm368 = vcmp.ge.f32.partialorder %v358, 0.0
      %v369 = vmul.f32 %v323, 0.01
      %v370 = vmul.f32 %v328, 0.01
      %v371 = vmul.f32 %v333, 0.01
      %v372 = vmul.f32 %v338, 0.01
      %v373 = vmul.f32 %v343, 0.01
      %v374 = vmul.f32 %v348, 0.01
      %v375 = vmul.f32 %v353, 0.01
      %v376 = vmul.f32 %v358, 0.01
      %v377 = vsel %vm361, %v323, %v369
      %v378 = vsel %vm362, %v328, %v370
      %v379 = vsel %vm363, %v333, %v371
      %v380 = vsel %vm364, %v338, %v372
      %v381 = vsel %vm365, %v343, %v373
      %v382 = vsel %vm366, %v348, %v374
      %v383 = vsel %vm367, %v353, %v375
      %v384 = vsel %vm368, %v358, %v376
      %vm385 = vcmask 64512
      %386 = vst.msk [vmem:[%s223] sm:$0xff] %vm385, %v377
      %387 = vst.msk [vmem:[%s223 + $0x8] sm:$0xff] %vm385, %v378
      %388 = vst.msk [vmem:[%s223 + $0x10] sm:$0xff] %vm385, %v379
      %389 = vst.msk [vmem:[%s223 + $0x18] sm:$0xff] %vm385, %v380
      %390 = vst.msk [vmem:[%s223 + $0x20] sm:$0xff] %vm385, %v381
      %391 = vst.msk [vmem:[%s223 + $0x28] sm:$0xff] %vm385, %v382
      %392 = vst.msk [vmem:[%s223 + $0x30] sm:$0xff] %vm385, %v383
      %393 = vst.msk [vmem:[%s223 + $0x38] sm:$0xff] %vm385, %v384
      %s394 = smul.u32 8, %s18
      %p395 = scmp.lt.s32.totalorder %s394, 15
      %s396 = scalar_select %p395, %s394, 15
      %p397 = scmp.lt.s32.totalorder %s19, 0
      %s398 = scalar_select %p397, %s19, 0
      %s399 = sadd.s32 %s398, %s396
      %s400 = smul.addr %s399, 8
      %s401 = scalar_lea.vmem %s3, %s400
      // Predicated region
      $region33: #{tpu_custom_call.1} parent=31 // pred_check
        %p402 = pneg %p124
      $region34: #{tpu_custom_call.1} parent=31 // pred_check_branch
        %404 = sbr.rel (%p402) target = $region36
      $region35: #{tpu_custom_call.1} parent=31 // pred_region
        %s405 = smul.u32 8, %s18
      $region36: #{tpu_custom_call.1} parent=31 // pred_fallthru
        _
    $region32: #{tpu_custom_call.1} parent=5 // pred_fallthru
      _
    %p406 = scmp.le.s32.totalorder 2, %s9
    // Predicated region
    $region37: #{tpu_custom_call.1} parent=5 // pred_check
      %p407 = pneg %p406
    $region38: #{tpu_custom_call.1} parent=5 // pred_check_branch
      %409 = sbr.rel (%p407) target = $region40
    $region39: #{tpu_custom_call.1} parent=5 // pred_region
      %s410 = ssub.s32 %s9, 2
      // Predicated region
      $region41: #{tpu_custom_call.1} parent=39 // pred_check
        %p411 = pneg %p130
      $region42: #{tpu_custom_call.1} parent=39 // pred_check_branch
        %413 = sbr.rel (%p411) target = $region44
      $region43: #{tpu_custom_call.1} parent=39 // pred_region
        %s414 = smul.u32 8, %s20
        %p415 = scmp.lt.s32.totalorder %s414, 15
        %s416 = scalar_select %p415, %s414, 15
        %p417 = scmp.lt.s32.totalorder %s21, 0
        %s418 = scalar_select %p417, %s21, 0
        %s419 = sadd.s32 %s418, %s416
        %s420 = smul.addr %s419, 8
        %s421 = scalar_lea.vmem %s3, %s420
      $region44: #{tpu_custom_call.1} parent=39 // pred_fallthru
        _
    $region40: #{tpu_custom_call.1} parent=5 // pred_fallthru
      _
  $region6: #{tpu_custom_call.1} parent=0 // loop_footer
    %s13 = sadd.s32 1, %s9
  $region7: #{tpu_custom_call.1} parent=0 // loop_footer_branch
    %8 = sbr.rel target = $region3
  $region8: #{tpu_custom_call.1} parent=0 // loop_exit
    _

// kernel: tpu_custom_call.1
$region0: #{tpu_custom_call.1}
  #allocation0 [shape = 'u32[]', space=smem, size = 0x4, offset = 0x4, fixed_abs, tag = 'smem constant byte address 0x4 - core index']
  #allocation1 [shape = 'u32[144,128]{1,0:T(1,128)}', space=vmem, size = 0x12000, scoped, tag = 'internal scratch']
  %s0 = inlined_call_operand.vmem [shape: f32[128,128], index: 0, kind: input, shape index: {}]
  %s1 = inlined_call_operand.vmem [shape: f32[128,8], index: 1, kind: input, shape index: {}]
  %s2 = inlined_call_operand.vmem [shape: f32[1,8], index: 2, kind: input, shape index: {}]
  %s3 = inlined_call_operand.vmem [shape: f32[128,8], index: 3, kind: output, shape index: {}]
  %s4 = sld [smem:[#allocation0]]
  $region45: #{tpu_custom_call.1} parent=0
    _
  %s6 = ssub.s32 1, %s4
  %s7 = scalar_select 0, %s6, %s4
  loop: start=0, step=1, limit=4
  $region2: #{tpu_custom_call.1} parent=0 // loop_pre_header
    _
  $region3: #{tpu_custom_call.1} parent=0 // loop_header
    %s9 = sphi 0, %s13
    %p10 = scmp.ge.s32.totalorder %s9, 4
    %s16 = sphi 0, %s28
    %s17 = sphi 0, %s24
    %s18 = sphi 0, %s16
    %s19 = sphi 0, %s17
    %s20 = sphi 0, %s18
    %s21 = sphi 0, %s19
    %s31 = sphi 0, %s33
    %s34 = sphi 0, %s31
    %s35 = sphi 0, %s34
    %s51 = sphi 0, %s35
    %s57 = sphi 0, %s59
    %s60 = sphi 0, %s57
    %s61 = sphi 0, %s60
    %s77 = sphi 0, %s61
    %s83 = sphi 0, %s85
    %s86 = sphi 0, %s83
    %s87 = sphi 0, %s86
    %s103 = sphi 0, %s87
    %s111 = sphi 0, %s113
    %s114 = sphi 0, %s111
    %s115 = sphi 0, %s114
    %s131 = sphi 0, %s115
  $region4: #{tpu_custom_call.1} parent=0 // loop_header_branch
    %12 = sbr.rel (%p10) target = $region8
  $region5: #{tpu_custom_call.1} parent=0 // loop_body
    %s14 = ssub.s32 %s9, 1
    %s15 = ssub.s32 %s9, 2
    %s22 = sadd.s32 1, %s17
    %p23 = scmp.ge.s32.totalorder %s22, 1
    %s24 = scalar_select %p23, 0, %s22
    %s25 = sadd.s32 1, %s16
    %s26 = scalar_select %p23, %s25, %s16
    %p27 = scmp.ge.s32.totalorder %s26, 2
    %s28 = scalar_select %p27, 0, %s26
    %s29 = ssub.s32 %s16, %s28
    %p30 = scmp.eq.s32.totalorder %s29, 0
    %s32 = sadd.s32 %s31, 1
    %s33 = scalar_select %p30, %s31, %s32
    %p36 = pneg %p30
    %p37 = scmp.eq.s32.totalorder %s9, 1
    %p38 = por %p36, %p37
    %p39 = scmp.ne.s32.totalorder %s31, %s34
    %p40 = scmp.eq.s32.totalorder %s9, 0
    %p41 = por %p39, %p40
    %p42 = scmp.ne.s32.totalorder %s31, %s34
    %p43 = scmp.eq.s32.totalorder %s14, 1
    %p44 = por %p42, %p43
    %p45 = scmp.ne.s32.totalorder %s34, %s35
    %p46 = scmp.eq.s32.totalorder %s14, 0
    %p47 = por %p45, %p46
    %p48 = scmp.ne.s32.totalorder %s34, %s35
    %p49 = scmp.eq.s32.totalorder %s15, 1
    %p50 = por %p48, %p49
    %p52 = scmp.ne.s32.totalorder %s35, %s51
    %p53 = scmp.eq.s32.totalorder %s15, 0
    %p54 = por %p52, %p53
    %s55 = ssub.s32 %s17, %s24
    %p56 = scmp.eq.s32.totalorder %s55, 0
    %s58 = sadd.s32 %s57, 1
    %s59 = scalar_select %p56, %s57, %s58
    %p62 = pneg %p56
    %p63 = scmp.eq.s32.totalorder %s9, 1
    %p64 = por %p62, %p63
    %p65 = scmp.ne.s32.totalorder %s57, %s60
    %p66 = scmp.eq.s32.totalorder %s9, 0
    %p67 = por %p65, %p66
    %p68 = scmp.ne.s32.totalorder %s57, %s60
    %p69 = scmp.eq.s32.totalorder %s14, 1
    %p70 = por %p68, %p69
    %p71 = scmp.ne.s32.totalorder %s60, %s61
    %p72 = scmp.eq.s32.totalorder %s14, 0
    %p73 = por %p71, %p72
    %p74 = scmp.ne.s32.totalorder %s60, %s61
    %p75 = scmp.eq.s32.totalorder %s15, 1
    %p76 = por %p74, %p75
    %p78 = scmp.ne.s32.totalorder %s61, %s77
    %p79 = scmp.eq.s32.totalorder %s15, 0
    %p80 = por %p78, %p79
    %s81 = ssub.s32 %s17, %s24
    %p82 = scmp.eq.s32.totalorder %s81, 0
    %s84 = sadd.s32 %s83, 1
    %s85 = scalar_select %p82, %s83, %s84
    %p88 = pneg %p82
    %p89 = scmp.eq.s32.totalorder %s9, 1
    %p90 = por %p88, %p89
    %p91 = scmp.ne.s32.totalorder %s83, %s86
    %p92 = scmp.eq.s32.totalorder %s9, 0
    %p93 = por %p91, %p92
    %p94 = scmp.ne.s32.totalorder %s83, %s86
    %p95 = scmp.eq.s32.totalorder %s14, 1
    %p96 = por %p94, %p95
    %p97 = scmp.ne.s32.totalorder %s86, %s87
    %p98 = scmp.eq.s32.totalorder %s14, 0
    %p99 = por %p97, %p98
    %p100 = scmp.ne.s32.totalorder %s86, %s87
    %p101 = scmp.eq.s32.totalorder %s15, 1
    %p102 = por %p100, %p101
    %p104 = scmp.ne.s32.totalorder %s87, %s103
    %p105 = scmp.eq.s32.totalorder %s15, 0
    %p106 = por %p104, %p105
    %s107 = ssub.s32 %s16, %s28
    %s108 = ssub.s32 %s17, %s24
    %s109 = sor.u32 %s107, %s108
    %p110 = scmp.eq.s32.totalorder %s109, 0
    %s112 = sadd.s32 %s111, 1
    %s113 = scalar_select %p110, %s111, %s112
    %p116 = pneg %p110
    %p117 = scmp.eq.s32.totalorder %s9, 1
    %p118 = por %p116, %p117
    %p119 = scmp.ne.s32.totalorder %s111, %s114
    %p120 = scmp.eq.s32.totalorder %s9, 0
    %p121 = por %p119, %p120
    %p122 = scmp.ne.s32.totalorder %s111, %s114
    %p123 = scmp.eq.s32.totalorder %s14, 1
    %p124 = por %p122, %p123
    %p125 = scmp.ne.s32.totalorder %s114, %s115
    %p126 = scmp.eq.s32.totalorder %s14, 0
    %p127 = por %p125, %p126
    %p128 = scmp.ne.s32.totalorder %s114, %s115
    %p129 = scmp.eq.s32.totalorder %s15, 1
    %p130 = por %p128, %p129
    %p132 = scmp.ne.s32.totalorder %s115, %s131
    %p133 = scmp.eq.s32.totalorder %s15, 0
    %p134 = por %p132, %p133
    %p135 = scmp.le.s32.totalorder 1, %s9
    %p136 = scmp.lt.s32.totalorder %s9, 3
    %p137 = pnand %p135, %p136
    %p138 = pneg %p137
    // Predicated region
    $region9: #{tpu_custom_call.1} parent=5 // pred_check
      _
    $region10: #{tpu_custom_call.1} parent=5 // pred_check_branch
      %140 = sbr.rel (%p137) target = $region12
    $region11: #{tpu_custom_call.1} parent=5 // pred_region
      %s141 = ssub.s32 %s9, 1
      // Predicated region
      $region13: #{tpu_custom_call.1} parent=11 // pred_check
        %p142 = pneg %p73
      $region14: #{tpu_custom_call.1} parent=11 // pred_check_branch
        %144 = sbr.rel (%p142) target = $region16
      $region15: #{tpu_custom_call.1} parent=11 // pred_region
        %p145 = scmp.lt.s32.totalorder %s19, 0
        %s146 = scalar_select %p145, %s19, 0
        %s147 = smul.addr %s146, 8
        %s148 = scalar_lea.vmem %s1, %s147
      $region16: #{tpu_custom_call.1} parent=11 // pred_fallthru
        _
      // Predicated region
      $region17: #{tpu_custom_call.1} parent=11 // pred_check
        %p149 = pneg %p99
      $region18: #{tpu_custom_call.1} parent=11 // pred_check_branch
        %151 = sbr.rel (%p149) target = $region20
      $region19: #{tpu_custom_call.1} parent=11 // pred_region
        %p152 = scmp.lt.s32.totalorder %s19, 0
        %s153 = scalar_select %p152, %s19, 0
        %s154 = scalar_lea.vmem %s2, %s153
      $region20: #{tpu_custom_call.1} parent=11 // pred_fallthru
        _
    $region12: #{tpu_custom_call.1} parent=5 // pred_fallthru
      _
    %p155 = scmp.lt.s32.totalorder %s9, 2
    // Predicated region
    $region21: #{tpu_custom_call.1} parent=5 // pred_check
      %p156 = pneg %p155
    $region22: #{tpu_custom_call.1} parent=5 // pred_check_branch
      %158 = sbr.rel (%p156) target = $region24
    $region23: #{tpu_custom_call.1} parent=5 // pred_region
      // Predicated region
      $region25: #{tpu_custom_call.1} parent=23 // pred_check
        %p159 = pneg %p41
      $region26: #{tpu_custom_call.1} parent=23 // pred_check_branch
        %161 = sbr.rel (%p159) target = $region28
      $region27: #{tpu_custom_call.1} parent=23 // pred_region
        %s162 = smul.u32 8, %s16
        %p163 = scmp.lt.s32.totalorder %s162, 15
        %s164 = scalar_select %p163, %s162, 15
        %s165 = smul.addr %s164, 8
        %s166 = scalar_lea.vmem %s0, %s165
        %s167 = smul.u32 8, %s16
      $region28: #{tpu_custom_call.1} parent=23 // pred_fallthru
        _
    $region24: #{tpu_custom_call.1} parent=5 // pred_fallthru
      _
    %p168 = scmp.le.s32.totalorder 1, %s9
    %p169 = scmp.lt.s32.totalorder %s9, 3
    %p170 = pnand %p168, %p169
    %p171 = pneg %p170
    // Predicated region
    $region29: #{tpu_custom_call.1} parent=5 // pred_check
      _
    $region30: #{tpu_custom_call.1} parent=5 // pred_check_branch
      %173 = sbr.rel (%p170) target = $region32
    $region31: #{tpu_custom_call.1} parent=5 // pred_region
      %s174 = ssub.s32 %s9, 1
      %s175 = smul.u32 8, %s18
      %p176 = scmp.lt.s32.totalorder %s175, 15
      %s177 = scalar_select %p176, %s175, 15
      %s178 = smul.addr %s177, 8
      %s179 = scalar_lea.vmem %s0, %s178
      %p180 = pneg %p47
      %p181 = pneg %p44
      %p182 = scmp.lt.s32.totalorder %s19, 0
      %s183 = scalar_select %p182, %s19, 0
      %s184 = smul.addr %s183, 8
      %s185 = scalar_lea.vmem %s1, %s184
      %p186 = pneg %p73
      %p187 = pneg %p70
      %p188 = scmp.lt.s32.totalorder %s19, 0
      %s189 = scalar_select %p188, %s19, 0
      %s190 = scalar_lea.vmem %s2, %s189
      %p191 = pneg %p99
      %p192 = pneg %p96
      %p193 = pneg %p127
      %p194 = pneg %p124
      %s195 = smul.u32 8, %s18
      %p196 = scmp.lt.s32.totalorder %s195, 15
      %s197 = scalar_select %p196, %s195, 15
      %p198 = scmp.lt.s32.totalorder %s19, 0
      %s199 = scalar_select %p198, %s19, 0
      %s200 = sadd.s32 %s199, %s197
      %s201 = smul.addr %s200, 8
      %s202 = scalar_lea.vmem %s3, %s201
      %s203 = smul.u32 8, %s18
      %p204 = scmp.lt.s32.totalorder %s203, 15
      %s205 = scalar_select %p204, %s203, 15
      %s206 = smul.addr %s205, 8
      %s207 = scalar_lea.vmem %s0, %s206
      %s208 = smul.u32 8, %s18
      %p209 = scmp.lt.s32.totalorder %s19, 0
      %s210 = scalar_select %p209, %s19, 0
      %s211 = smul.addr %s210, 8
      %s212 = scalar_lea.vmem %s1, %s211
      %p213 = scmp.lt.s32.totalorder %s19, 0
      %s214 = scalar_select %p213, %s19, 0
      %s215 = scalar_lea.vmem %s2, %s214
      %s216 = smul.u32 8, %s18
      %p217 = scmp.lt.s32.totalorder %s216, 15
      %s218 = scalar_select %p217, %s216, 15
      %p219 = scmp.lt.s32.totalorder %s19, 0
      %s220 = scalar_select %p219, %s19, 0
      %s221 = sadd.s32 %s220, %s218
      %s222 = smul.addr %s221, 8
      %s223 = scalar_lea.vmem %s3, %s222
      %s224 = smul.u32 8, %s18
      %v225 = vld [vmem:[%s207] sm:$0xff]
      %v226 = vld [vmem:[%s207 + $0x8] sm:$0xff]
      %v227 = vld [vmem:[%s207 + $0x10] sm:$0xff]
      %v228 = vld [vmem:[%s207 + $0x18] sm:$0xff]
      %v229 = vld [vmem:[%s207 + $0x20] sm:$0xff]
      %v230 = vld [vmem:[%s207 + $0x28] sm:$0xff]
      %v231 = vld [vmem:[%s207 + $0x30] sm:$0xff]
      %v232 = vld [vmem:[%s207 + $0x38] sm:$0xff]
      %v233 = vld [vmem:[%s212] sm:$0xff]
      %v234 = vld [vmem:[%s212 + $0x8] sm:$0xff]
      %v235 = vld [vmem:[%s212 + $0x10] sm:$0xff]
      %v236 = vld [vmem:[%s212 + $0x18] sm:$0xff]
      %v237 = vld [vmem:[%s212 + $0x20] sm:$0xff]
      %v238 = vld [vmem:[%s212 + $0x28] sm:$0xff]
      %v239 = vld [vmem:[%s212 + $0x30] sm:$0xff]
      %v240 = vld [vmem:[%s212 + $0x38] sm:$0xff]
      %v241 = vld [vmem:[%s212 + $0x40] sm:$0xff]
      %v242 = vld [vmem:[%s212 + $0x48] sm:$0xff]
      %v243 = vld [vmem:[%s212 + $0x50] sm:$0xff]
      %v244 = vld [vmem:[%s212 + $0x58] sm:$0xff]
      %v245 = vld [vmem:[%s212 + $0x60] sm:$0xff]
      %v246 = vld [vmem:[%s212 + $0x68] sm:$0xff]
      %v247 = vld [vmem:[%s212 + $0x70] sm:$0xff]
      %v248 = vld [vmem:[%s212 + $0x78] sm:$0xff]
      %v249 = vld [vmem:[%s215] sm:$0x1]
      %v251 = vlaneseq
      %v252 = vshrl.u32 %v251, 7
      %v253 = vsub.s32 0, %v252
      %v254 = vrot.slane %v249, %v253
      %256 = vmatprep.subr.mxu0 0.0
      %257 = vmatpush1.msra.mxu0 %v248
      %258 = vmatprep.subr.mxu0 0.0
      %259 = vmatpush1.msra.mxu0 %v247
      %260 = vmatprep.subr.mxu0 0.0
      %261 = vmatpush1.msra.mxu0 %v246
      %262 = vmatprep.subr.mxu0 0.0
      %263 = vmatpush1.msra.mxu0 %v245
      %264 = vmatprep.subr.mxu0 0.0
      %265 = vmatpush1.msra.mxu0 %v244
      %266 = vmatprep.subr.mxu0 0.0
      %267 = vmatpush1.msra.mxu0 %v243
      %268 = vmatprep.subr.mxu0 0.0
      %269 = vmatpush1.msra.mxu0 %v242
      %270 = vmatprep.subr.mxu0 0.0
      %271 = vmatpush1.msra.mxu0 %v241
      %272 = vmatprep.subr.mxu0 0.0
      %273 = vmatpush1.msra.mxu0 %v240
      %274 = vmatprep.subr.mxu0 0.0
      %275 = vmatpush1.msra.mxu0 %v239
      %276 = vmatprep.subr.mxu0 0.0
      %277 = vmatpush1.msra.mxu0 %v238
      %278 = vmatprep.subr.mxu0 0.0
      %279 = vmatpush1.msra.mxu0 %v237
      %280 = vmatprep.subr.mxu0 0.0
      %281 = vmatpush1.msra.mxu0 %v236
      %282 = vmatprep.subr.mxu0 0.0
      %283 = vmatpush1.msra.mxu0 %v235
      %284 = vmatprep.subr.mxu0 0.0
      %285 = vmatpush1.msra.mxu0 %v234
      %286 = vmatprep.subr.mxu0 0.0
      %287 = vmatpush1.msra.mxu0 %v233
      %288 = vmatprep.subr.mxu0 0.0
      %289 = vmatpush2.msra.mxu0 0.0
      %290 = vmatprep.subr.mxu0 0.0
      %291 = vmatpush2.msra.mxu0 0.0
      %292 = vmatprep.subr.mxu0 0.0
      %293 = vmatpush2.msra.mxu0 0.0
      %294 = vmatprep.subr.mxu0 0.0
      %295 = vmatpush2.msra.mxu0 0.0
      %296 = vmatprep.subr.mxu0 0.0
      %297 = vmatpush2.msra.mxu0 0.0
      %298 = vmatprep.subr.mxu0 0.0
      %299 = vmatpush2.msra.mxu0 0.0
      %300 = vmatprep.subr.mxu0 0.0
      %301 = vmatpush2.msra.mxu0 0.0
      %302 = vmatprep.subr.mxu0 0.0
      %303 = vmatpush2.msra.mxu0 0.0
      %304 = vmatprep.subr.mxu0 0.0
      %305 = vmatpush2.msra.mxu0 0.0
      %306 = vmatprep.subr.mxu0 0.0
      %307 = vmatpush2.msra.mxu0 0.0
      %308 = vmatprep.subr.mxu0 0.0
      %309 = vmatpush2.msra.mxu0 0.0
      %310 = vmatprep.subr.mxu0 0.0
      %311 = vmatpush2.msra.mxu0 0.0
      %312 = vmatprep.subr.mxu0 0.0
      %313 = vmatpush2.msra.mxu0 0.0
      %314 = vmatprep.subr.mxu0 0.0
      %315 = vmatpush2.msra.mxu0 0.0
      %316 = vmatprep.subr.mxu0 0.0
      %317 = vmatpush2.msra.mxu0 0.0
      %318 = vmatprep.subr.mxu0 0.0
      %319 = vmatpush2.msra.mxu0 0.0
      %320 = vmatprep.mubr.f32.mxu0 0.0
      %321 = vmatmul.mubr.f32.gmra.mxu0 %v225
      %v322 = vpop.f32.mrf.mxu0
      %v323 = vadd.f32 %v254, %v322
      %v324 = vpop.f32.mrf.mxu0
      %325 = vmatprep.mubr.f32.mxu0 0.0
      %326 = vmatmul.mubr.f32.gmra.mxu0 %v226
      %v327 = vpop.f32.mrf.mxu0
      %v328 = vadd.f32 %v254, %v327
      %v329 = vpop.f32.mrf.mxu0
      %330 = vmatprep.mubr.f32.mxu0 0.0
      %331 = vmatmul.mubr.f32.gmra.mxu0 %v227
      %v332 = vpop.f32.mrf.mxu0
      %v333 = vadd.f32 %v254, %v332
      %v334 = vpop.f32.mrf.mxu0
      %335 = vmatprep.mubr.f32.mxu0 0.0
      %336 = vmatmul.mubr.f32.gmra.mxu0 %v228
      %v337 = vpop.f32.mrf.mxu0
      %v338 = vadd.f32 %v254, %v337
      %v339 = vpop.f32.mrf.mxu0
      %340 = vmatprep.mubr.f32.mxu0 0.0
      %341 = vmatmul.mubr.f32.gmra.mxu0 %v229
      %v342 = vpop.f32.mrf.mxu0
      %v343 = vadd.f32 %v254, %v342
      %v344 = vpop.f32.mrf.mxu0
      %345 = vmatprep.mubr.f32.mxu0 0.0
      %346 = vmatmul.mubr.f32.gmra.mxu0 %v230
      %v347 = vpop.f32.mrf.mxu0
      %v348 = vadd.f32 %v254, %v347
      %v349 = vpop.f32.mrf.mxu0
      %350 = vmatprep.mubr.f32.mxu0 0.0
      %351 = vmatmul.mubr.f32.gmra.mxu0 %v231
      %v352 = vpop.f32.mrf.mxu0
      %v353 = vadd.f32 %v254, %v352
      %v354 = vpop.f32.mrf.mxu0
      %355 = vmatprep.mubr.f32.mxu0 0.0
      %356 = vmatmul.mubr.f32.gmra.mxu0 %v232
      %v357 = vpop.f32.mrf.mxu0
      %v358 = vadd.f32 %v254, %v357
      %v359 = vpop.f32.mrf.mxu0
      %360 = vdwg.mxu0
      %vm361 = vcmp.ge.f32.partialorder %v323, 0.0
      %vm362 = vcmp.ge.f32.partialorder %v328, 0.0
      %vm363 = vcmp.ge.f32.partialorder %v333, 0.0
      %vm364 = vcmp.ge.f32.partialorder %v338, 0.0
      %vm365 = vcmp.ge.f32.partialorder %v343, 0.0
      %vm366 = vcmp.ge.f32.partialorder %v348, 0.0
      %vm367 = vcmp.ge.f32.partialorder %v353, 0.0
      %vm368 = vcmp.ge.f32.partialorder %v358, 0.0
      %v369 = vmul.f32 %v323, 0.01
      %v370 = vmul.f32 %v328, 0.01
      %v371 = vmul.f32 %v333, 0.01
      %v372 = vmul.f32 %v338, 0.01
      %v373 = vmul.f32 %v343, 0.01
      %v374 = vmul.f32 %v348, 0.01
      %v375 = vmul.f32 %v353, 0.01
      %v376 = vmul.f32 %v358, 0.01
      %v377 = vsel %vm361, %v323, %v369
      %v378 = vsel %vm362, %v328, %v370
      %v379 = vsel %vm363, %v333, %v371
      %v380 = vsel %vm364, %v338, %v372
      %v381 = vsel %vm365, %v343, %v373
      %v382 = vsel %vm366, %v348, %v374
      %v383 = vsel %vm367, %v353, %v375
      %v384 = vsel %vm368, %v358, %v376
      %vm385 = vcmask 64512
      %386 = vst.msk [vmem:[%s223] sm:$0xff] %vm385, %v377
      %387 = vst.msk [vmem:[%s223 + $0x8] sm:$0xff] %vm385, %v378
      %388 = vst.msk [vmem:[%s223 + $0x10] sm:$0xff] %vm385, %v379
      %389 = vst.msk [vmem:[%s223 + $0x18] sm:$0xff] %vm385, %v380
      %390 = vst.msk [vmem:[%s223 + $0x20] sm:$0xff] %vm385, %v381
      %391 = vst.msk [vmem:[%s223 + $0x28] sm:$0xff] %vm385, %v382
      %392 = vst.msk [vmem:[%s223 + $0x30] sm:$0xff] %vm385, %v383
      %393 = vst.msk [vmem:[%s223 + $0x38] sm:$0xff] %vm385, %v384
      %s394 = smul.u32 8, %s18
      %p395 = scmp.lt.s32.totalorder %s394, 15
      %s396 = scalar_select %p395, %s394, 15
      %p397 = scmp.lt.s32.totalorder %s19, 0
      %s398 = scalar_select %p397, %s19, 0
      %s399 = sadd.s32 %s398, %s396
      %s400 = smul.addr %s399, 8
      %s401 = scalar_lea.vmem %s3, %s400
      // Predicated region
      $region33: #{tpu_custom_call.1} parent=31 // pred_check
        %p402 = pneg %p124
      $region34: #{tpu_custom_call.1} parent=31 // pred_check_branch
        %404 = sbr.rel (%p402) target = $region36
      $region35: #{tpu_custom_call.1} parent=31 // pred_region
        %s405 = smul.u32 8, %s18
      $region36: #{tpu_custom_call.1} parent=31 // pred_fallthru
        _
    $region32: #{tpu_custom_call.1} parent=5 // pred_fallthru
      _
    %p406 = scmp.le.s32.totalorder 2, %s9
    // Predicated region
    $region37: #{tpu_custom_call.1} parent=5 // pred_check
      %p407 = pneg %p406
    $region38: #{tpu_custom_call.1} parent=5 // pred_check_branch
      %409 = sbr.rel (%p407) target = $region40
    $region39: #{tpu_custom_call.1} parent=5 // pred_region
      %s410 = ssub.s32 %s9, 2
      // Predicated region
      $region41: #{tpu_custom_call.1} parent=39 // pred_check
        %p411 = pneg %p130
      $region42: #{tpu_custom_call.1} parent=39 // pred_check_branch
        %413 = sbr.rel (%p411) target = $region44
      $region43: #{tpu_custom_call.1} parent=39 // pred_region
        %s414 = smul.u32 8, %s20
        %p415 = scmp.lt.s32.totalorder %s414, 15
        %s416 = scalar_select %p415, %s414, 15
        %p417 = scmp.lt.s32.totalorder %s21, 0
        %s418 = scalar_select %p417, %s21, 0
        %s419 = sadd.s32 %s418, %s416
        %s420 = smul.addr %s419, 8
        %s421 = scalar_lea.vmem %s3, %s420
      $region44: #{tpu_custom_call.1} parent=39 // pred_fallthru
        _
    $region40: #{tpu_custom_call.1} parent=5 // pred_fallthru
      _
  $region6: #{tpu_custom_call.1} parent=0 // loop_footer
    %s13 = sadd.s32 1, %s9
  $region7: #{tpu_custom_call.1} parent=0 // loop_footer_branch
    %8 = sbr.rel target = $region3
  $region8: #{tpu_custom_call.1} parent=0 // loop_exit
    _

</llo_original>
